<compile_context>
chip_gen: v5e
topology: v5e:2x2
jax: 0.10.0
libtpu: 0.0.40
codegen_flags: <defaults>
</compile_context>

<pallas_src>
import functools

import jax
import jax.numpy as jnp
from jax.experimental import pallas as pl
from jax.experimental.pallas import tpu as pltpu

HIDDEN = 64            # per-encoder feature width
PACKED = 2 * HIDDEN    # predictor + target fused along lanes -> 128 (lane-dense)
NEG_SLOPE = 0.01       # PyTorch LeakyReLU default


def _leaky_relu(x):
    return jnp.where(x >= 0, x, NEG_SLOPE * x)


def _round_up(n, m):
    return ((n + m - 1) // m) * m


# ---------------------------------------------------------------------------
# Kernel: one fused 3-layer MLP over the packed (pred | targ) 128-wide layers.
# ---------------------------------------------------------------------------
def rnd_fused_kernel(x_ref, w1, b1, w2, b2, w3, b3, out_ref):
    x = x_ref[...]
    h = _leaky_relu(jnp.dot(x, w1[...], preferred_element_type=jnp.float32) + b1[...])
    h = _leaky_relu(jnp.dot(h, w2[...], preferred_element_type=jnp.float32) + b2[...])
    out_ref[...] = jnp.dot(h, w3[...], preferred_element_type=jnp.float32) + b3[...]


def pack_rnd_params(pred_params, targ_params):
    """Fuse two FCEncoders into one 128-wide network (concat / block-diagonal)."""
    pw1, pb1, pw2, pb2, pw3, pb3 = pred_params
    tw1, tb1, tw2, tb2, tw3, tb3 = targ_params
    z = jnp.zeros((HIDDEN, HIDDEN), jnp.float32)
    w1 = jnp.concatenate([pw1, tw1], axis=1)          # (obs_dim, 128)
    b1 = jnp.concatenate([pb1, tb1], axis=1)          # (1, 128)
    w2 = jnp.block([[pw2, z], [z, tw2]])              # (128, 128) block-diagonal
    b2 = jnp.concatenate([pb2, tb2], axis=1)          # (1, 128)
    w3 = jnp.block([[pw3, z], [z, tw3]])              # (128, 128) block-diagonal
    b3 = jnp.concatenate([pb3, tb3], axis=1)          # (1, 128)
    return (w1, b1, w2, b2, w3, b3)


@functools.partial(jax.jit, static_argnames=("tile_b",))
def rnd_forward(x, pred_params, targ_params, *, tile_b=256):
    B, obs_dim = x.shape
    assert tile_b % 8 == 0, "tile_b must be sublane-aligned (multiple of 8)"

    w1, b1, w2, b2, w3, b3 = pack_rnd_params(pred_params, targ_params)

    # Batch tile: large for MXU/DMA efficiency, but never larger than the
    # sublane-padded batch. Zero-pad ragged batches to a tile multiple.
    tb = min(tile_b, _round_up(B, 8))
    Bp = _round_up(B, tb)
    if Bp != B:
        x = jnp.pad(x, ((0, Bp - B), (0, 0)))

    full = lambda shape: pl.BlockSpec(shape, lambda i: (0, 0))

    grid_spec = pltpu.PrefetchScalarGridSpec(
        num_scalar_prefetch=0,
        grid=(Bp // tb,),
        in_specs=[
            pl.BlockSpec((tb, obs_dim), lambda i: (i, 0)),
            full(w1.shape), full(b1.shape),
            full(w2.shape), full(b2.shape),
            full(w3.shape), full(b3.shape),
        ],
        out_specs=pl.BlockSpec((tb, PACKED), lambda i: (i, 0)),
    )

    out = pl.pallas_call(
        rnd_fused_kernel,
        grid_spec=grid_spec,
        out_shape=jax.ShapeDtypeStruct((Bp, PACKED), jnp.float32),
        compiler_params=pltpu.CompilerParams(
            dimension_semantics=("parallel",),
            vmem_limit_bytes=32 * 1024 * 1024,
        ),
    )(x, w1, b1, w2, b2, w3, b3)

    out = out[:B]
    return out[:, :HIDDEN], out[:, HIDDEN:]


# ---------------------------------------------------------------------------
# Init + pure-JAX reference.
# ---------------------------------------------------------------------------
def init_fc_encoder_params(key, obs_dim):
    """Mimics nn.Linear's U(-1/sqrt(fan_in), 1/sqrt(fan_in)) init.

    Weights stored transposed as (in_dim, out_dim); biases as (1, out_dim).
    """
    dims = [(obs_dim, HIDDEN), (HIDDEN, HIDDEN), (HIDDEN, HIDDEN)]
    params = []
    for (fan_in, fan_out) in dims:
        key, kw, kb = jax.random.split(key, 3)
        bound = 1.0 / jnp.sqrt(jnp.float32(fan_in))
        w = jax.random.uniform(kw, (fan_in, fan_out), jnp.float32, -bound, bound)
        b = jax.random.uniform(kb, (1, fan_out), jnp.float32, -bound, bound)
        params += [w, b]
    return tuple(params), key


def _encode_ref(x, w1, b1, w2, b2, w3, b3):
    h = _leaky_relu(jnp.dot(x, w1, preferred_element_type=jnp.float32) + b1)
    h = _leaky_relu(jnp.dot(h, w2, preferred_element_type=jnp.float32) + b2)
    return jnp.dot(h, w3, preferred_element_type=jnp.float32) + b3


def reference_forward(x, pred_params, targ_params):
    return (_encode_ref(x, *pred_params), _encode_ref(x, *targ_params))


if __name__ == "__main__":
    # TODO(synk): ConvEncoder branch (3-D obs) not implemented; the reference
    # module's feature_dim is a float (36*48*32/16) which nn.Linear rejects, so
    # only the FCEncoder (integer obs_shape) path is realized here.
    key = jax.random.PRNGKey(0)
    B, obs_dim = 50, 32   # ragged batch to exercise the padded-tile path

    key, kx = jax.random.split(key)
    x = jax.random.normal(kx, (B, obs_dim), jnp.float32)

    pred_params, key = init_fc_encoder_params(key, obs_dim)
    targ_params, key = init_fc_encoder_params(key, obs_dim)

    # Default (large tile, single grid step) path.
    pred, targ = rnd_forward(x, pred_params, targ_params)
    # Multi-grid-step path (several parallel tiles + padded ragged tail).
    pred2, targ2 = rnd_forward(x, pred_params, targ_params, tile_b=16)
    pred, targ, pred2, targ2 = jax.block_until_ready((pred, targ, pred2, targ2))

    ref_pred, ref_targ = reference_forward(x, pred_params, targ_params)
    assert pred.shape == (B, HIDDEN) and targ.shape == (B, HIDDEN)
    assert jnp.allclose(pred, ref_pred, atol=1e-5, rtol=1e-5)
    assert jnp.allclose(targ, ref_targ, atol=1e-5, rtol=1e-5)
    assert jnp.allclose(pred2, ref_pred, atol=1e-5, rtol=1e-5)
    assert jnp.allclose(targ2, ref_targ, atol=1e-5, rtol=1e-5)

    print("KERNEL_OK")
</pallas_src>

<mosaic_0001>
module attributes {stable_mosaic.version = 11 : i64} {
  func.func @rnd_fused_kernel(%arg0: i32, %arg1: memref<56x32xf32, #tpu.memory_space<vmem>>, %arg2: memref<32x128xf32, #tpu.memory_space<vmem>>, %arg3: memref<1x128xf32, #tpu.memory_space<vmem>>, %arg4: memref<128x128xf32, #tpu.memory_space<vmem>>, %arg5: memref<1x128xf32, #tpu.memory_space<vmem>>, %arg6: memref<128x128xf32, #tpu.memory_space<vmem>>, %arg7: memref<1x128xf32, #tpu.memory_space<vmem>>, %arg8: memref<56x128xf32, #tpu.memory_space<vmem>>) attributes {dimension_semantics = [#tpu.dimension_semantics<parallel>], iteration_bounds = array<i64: 1>, scalar_prefetch = 0 : i64, scratch_operands = 0 : i64, tpu.core_type = #tpu.core_type<tc>, window_params = [{transform_indices = @transform_0, window_bounds = array<i64: 56, 32>}, {pipeline_mode = #tpu.pipeline_mode<synchronous>, transform_indices = @transform_1, window_bounds = array<i64: 32, 128>}, {pipeline_mode = #tpu.pipeline_mode<synchronous>, transform_indices = @transform_2, window_bounds = array<i64: 1, 128>}, {pipeline_mode = #tpu.pipeline_mode<synchronous>, transform_indices = @transform_3, window_bounds = array<i64: 128, 128>}, {pipeline_mode = #tpu.pipeline_mode<synchronous>, transform_indices = @transform_4, window_bounds = array<i64: 1, 128>}, {pipeline_mode = #tpu.pipeline_mode<synchronous>, transform_indices = @transform_5, window_bounds = array<i64: 128, 128>}, {pipeline_mode = #tpu.pipeline_mode<synchronous>, transform_indices = @transform_6, window_bounds = array<i64: 1, 128>}, {transform_indices = @transform_7, window_bounds = array<i64: 56, 128>}]} {
    %c0 = arith.constant 0 : index
    %c0_0 = arith.constant 0 : index
    %0 = vector.load %arg1[%c0, %c0_0] : memref<56x32xf32, #tpu.memory_space<vmem>>, vector<56x32xf32>
    %c0_1 = arith.constant 0 : index
    %c0_2 = arith.constant 0 : index
    %1 = vector.load %arg2[%c0_1, %c0_2] : memref<32x128xf32, #tpu.memory_space<vmem>>, vector<32x128xf32>
    %cst = arith.constant dense<0.000000e+00> : vector<56x128xf32>
    %2 = tpu.matmul %0, %1, %cst {dimension_numbers = #tpu.dot_dimension_numbers<[1], [0], [0], [1], [0, 0, 1, 1], [], []>} : vector<56x32xf32>, vector<32x128xf32>, vector<56x128xf32> -> vector<56x128xf32>
    %c0_3 = arith.constant 0 : index
    %c0_4 = arith.constant 0 : index
    %3 = vector.load %arg3[%c0_3, %c0_4] : memref<1x128xf32, #tpu.memory_space<vmem>>, vector<1x128xf32>
    %4 = vector.broadcast %3 : vector<1x128xf32> to vector<56x128xf32>
    %5 = arith.addf %2, %4 : vector<56x128xf32>
    %cst_5 = arith.constant 0.000000e+00 : f32
    %6 = vector.broadcast %cst_5 : f32 to vector<56x128xf32>
    %7 = arith.cmpf oge, %5, %6 : vector<56x128xf32>
    %cst_6 = arith.constant 0.00999999977 : f32
    %8 = vector.broadcast %cst_6 : f32 to vector<56x128xf32>
    %9 = arith.mulf %8, %5 : vector<56x128xf32>
    %10 = arith.select %7, %5, %9 : vector<56x128xi1>, vector<56x128xf32>
    %c0_7 = arith.constant 0 : index
    %c0_8 = arith.constant 0 : index
    %11 = vector.load %arg4[%c0_7, %c0_8] : memref<128x128xf32, #tpu.memory_space<vmem>>, vector<128x128xf32>
    %cst_9 = arith.constant dense<0.000000e+00> : vector<56x128xf32>
    %12 = tpu.matmul %10, %11, %cst_9 {dimension_numbers = #tpu.dot_dimension_numbers<[1], [0], [0], [1], [0, 0, 1, 1], [], []>} : vector<56x128xf32>, vector<128x128xf32>, vector<56x128xf32> -> vector<56x128xf32>
    %c0_10 = arith.constant 0 : index
    %c0_11 = arith.constant 0 : index
    %13 = vector.load %arg5[%c0_10, %c0_11] : memref<1x128xf32, #tpu.memory_space<vmem>>, vector<1x128xf32>
    %14 = vector.broadcast %13 : vector<1x128xf32> to vector<56x128xf32>
    %15 = arith.addf %12, %14 : vector<56x128xf32>
    %cst_12 = arith.constant 0.000000e+00 : f32
    %16 = vector.broadcast %cst_12 : f32 to vector<56x128xf32>
    %17 = arith.cmpf oge, %15, %16 : vector<56x128xf32>
    %cst_13 = arith.constant 0.00999999977 : f32
    %18 = vector.broadcast %cst_13 : f32 to vector<56x128xf32>
    %19 = arith.mulf %18, %15 : vector<56x128xf32>
    %20 = arith.select %17, %15, %19 : vector<56x128xi1>, vector<56x128xf32>
    %c0_14 = arith.constant 0 : index
    %c0_15 = arith.constant 0 : index
    %21 = vector.load %arg6[%c0_14, %c0_15] : memref<128x128xf32, #tpu.memory_space<vmem>>, vector<128x128xf32>
    %cst_16 = arith.constant dense<0.000000e+00> : vector<56x128xf32>
    %22 = tpu.matmul %20, %21, %cst_16 {dimension_numbers = #tpu.dot_dimension_numbers<[1], [0], [0], [1], [0, 0, 1, 1], [], []>} : vector<56x128xf32>, vector<128x128xf32>, vector<56x128xf32> -> vector<56x128xf32>
    %c0_17 = arith.constant 0 : index
    %c0_18 = arith.constant 0 : index
    %23 = vector.load %arg7[%c0_17, %c0_18] : memref<1x128xf32, #tpu.memory_space<vmem>>, vector<1x128xf32>
    %24 = vector.broadcast %23 : vector<1x128xf32> to vector<56x128xf32>
    %25 = arith.addf %22, %24 : vector<56x128xf32>
    %c0_19 = arith.constant 0 : index
    %c0_20 = arith.constant 0 : index
    %26 = vector.load %arg8[%c0_19, %c0_20] : memref<56x128xf32, #tpu.memory_space<vmem>>, vector<56x128xf32>
    tpu.vector_store %arg8[%c0_19, %c0_20], %25 {strides = array<i32>} : memref<56x128xf32, #tpu.memory_space<vmem>>, vector<56x128xf32>,
    return
  }
  func.func @transform_0(%arg0: i32) -> (i32, i32) {
    %c0_i32 = arith.constant 0 : i32
    %c0_i32_0 = arith.constant 0 : i32
    return %arg0, %c0_i32 : i32, i32
  }
  func.func @transform_1(%arg0: i32) -> (i32, i32) {
    %c0_i32 = arith.constant 0 : i32
    %c0_i32_0 = arith.constant 0 : i32
    %c0_i32_1 = arith.constant 0 : i32
    return %c0_i32, %c0_i32_0 : i32, i32
  }
  func.func @transform_2(%arg0: i32) -> (i32, i32) {
    %c0_i32 = arith.constant 0 : i32
    %c0_i32_0 = arith.constant 0 : i32
    %c0_i32_1 = arith.constant 0 : i32
    return %c0_i32, %c0_i32_0 : i32, i32
  }
  func.func @transform_3(%arg0: i32) -> (i32, i32) {
    %c0_i32 = arith.constant 0 : i32
    %c0_i32_0 = arith.constant 0 : i32
    %c0_i32_1 = arith.constant 0 : i32
    return %c0_i32, %c0_i32_0 : i32, i32
  }
  func.func @transform_4(%arg0: i32) -> (i32, i32) {
    %c0_i32 = arith.constant 0 : i32
    %c0_i32_0 = arith.constant 0 : i32
    %c0_i32_1 = arith.constant 0 : i32
    return %c0_i32, %c0_i32_0 : i32, i32
  }
  func.func @transform_5(%arg0: i32) -> (i32, i32) {
    %c0_i32 = arith.constant 0 : i32
    %c0_i32_0 = arith.constant 0 : i32
    %c0_i32_1 = arith.constant 0 : i32
    return %c0_i32, %c0_i32_0 : i32, i32
  }
  func.func @transform_6(%arg0: i32) -> (i32, i32) {
    %c0_i32 = arith.constant 0 : i32
    %c0_i32_0 = arith.constant 0 : i32
    %c0_i32_1 = arith.constant 0 : i32
    return %c0_i32, %c0_i32_0 : i32, i32
  }
  func.func @transform_7(%arg0: i32) -> (i32, i32) {
    %c0_i32 = arith.constant 0 : i32
    %c0_i32_0 = arith.constant 0 : i32
    return %arg0, %c0_i32 : i32, i32
  }
}

</mosaic_0001>

<llo_original>
// kernel: rnd_forward.1
$region0: #{rnd_forward.1}
  #allocation0 [shape = 'u32[]', space=smem, size = 0x4, offset = 0x4, fixed_abs, tag = 'smem constant byte address 0x4 - core index']
  #allocation1 [shape = 'u32[72,128]{1,0:T(1,128)}', space=vmem, size = 0x9000, scoped, tag = 'internal scratch']
  %s0 = inlined_call_operand.vmem [shape: f32[56,32], index: 0, kind: input, shape index: {}]
  %s1 = inlined_call_operand.vmem [shape: f32[32,128], index: 1, kind: input, shape index: {}]
  %s2 = inlined_call_operand.vmem [shape: f32[1,128], index: 2, kind: input, shape index: {}]
  %s3 = inlined_call_operand.vmem [shape: f32[128,128], index: 3, kind: input, shape index: {}]
  %s4 = inlined_call_operand.vmem [shape: f32[1,128], index: 4, kind: input, shape index: {}]
  %s5 = inlined_call_operand.vmem [shape: f32[128,128], index: 5, kind: input, shape index: {}]
  %s6 = inlined_call_operand.vmem [shape: f32[1,128], index: 6, kind: input, shape index: {}]
  %s7 = inlined_call_operand.vmem [shape: f32[56,128], index: 7, kind: output, shape index: {}]
  %s8 = sld [smem:[#allocation0]]
  $region38: #{rnd_forward.1} parent=0
    _
  %s10 = ssub.s32 1, %s8
  %s11 = scalar_select 0, %s10, %s8
  // Predicated region
  $region2: #{rnd_forward.1} parent=0 // pred_check
    _
  $region3: #{rnd_forward.1} parent=0 // pred_check_branch
    %13 = sbr.rel (0) target = $region5
  $region4: #{rnd_forward.1} parent=0 // pred_region
    _
  $region5: #{rnd_forward.1} parent=0 // pred_fallthru
    _
  // Predicated region
  $region6: #{rnd_forward.1} parent=0 // pred_check
    _
  $region7: #{rnd_forward.1} parent=0 // pred_check_branch
    %15 = sbr.rel (0) target = $region9
  $region8: #{rnd_forward.1} parent=0 // pred_region
    _
  $region9: #{rnd_forward.1} parent=0 // pred_fallthru
    _
  // Predicated region
  $region10: #{rnd_forward.1} parent=0 // pred_check
    _
  $region11: #{rnd_forward.1} parent=0 // pred_check_branch
    %17 = sbr.rel (0) target = $region13
  $region12: #{rnd_forward.1} parent=0 // pred_region
    _
  $region13: #{rnd_forward.1} parent=0 // pred_fallthru
    _
  // Predicated region
  $region14: #{rnd_forward.1} parent=0 // pred_check
    _
  $region15: #{rnd_forward.1} parent=0 // pred_check_branch
    %19 = sbr.rel (0) target = $region17
  $region16: #{rnd_forward.1} parent=0 // pred_region
    _
  $region17: #{rnd_forward.1} parent=0 // pred_fallthru
    _
  // Predicated region
  $region18: #{rnd_forward.1} parent=0 // pred_check
    _
  $region19: #{rnd_forward.1} parent=0 // pred_check_branch
    %21 = sbr.rel (0) target = $region21
  $region20: #{rnd_forward.1} parent=0 // pred_region
    _
  $region21: #{rnd_forward.1} parent=0 // pred_fallthru
    _
  // Predicated region
  $region22: #{rnd_forward.1} parent=0 // pred_check
    _
  $region23: #{rnd_forward.1} parent=0 // pred_check_branch
    %23 = sbr.rel (0) target = $region25
  $region24: #{rnd_forward.1} parent=0 // pred_region
    _
  $region25: #{rnd_forward.1} parent=0 // pred_fallthru
    _
  // Predicated region
  $region26: #{rnd_forward.1} parent=0 // pred_check
    _
  $region27: #{rnd_forward.1} parent=0 // pred_check_branch
    %25 = sbr.rel (0) target = $region29
  $region28: #{rnd_forward.1} parent=0 // pred_region
    _
  $region29: #{rnd_forward.1} parent=0 // pred_fallthru
    _
  %v26 = vld [vmem:[%s0] sm:$0xff]
  %v27 = vld [vmem:[%s0 + $0x8] sm:$0xff]
  %v28 = vld [vmem:[%s0 + $0x10] sm:$0xff]
  %v29 = vld [vmem:[%s0 + $0x18] sm:$0xff]
  %v30 = vld [vmem:[%s0 + $0x20] sm:$0xff]
  %v31 = vld [vmem:[%s0 + $0x28] sm:$0xff]
  %v32 = vld [vmem:[%s0 + $0x30] sm:$0xff]
  %v33 = vld [vmem:[%s1] sm:$0xff]
  %v34 = vld [vmem:[%s1 + $0x8] sm:$0xff]
  %v35 = vld [vmem:[%s1 + $0x10] sm:$0xff]
  %v36 = vld [vmem:[%s1 + $0x18] sm:$0xff]
  %v37 = vld [vmem:[%s2] sm:$0x1]
  %v39 = vperm.slane %v37, 0
  %vm41 = vcmask 261120
  %v43 = vsel %vm41, %v26, 0
  %v46 = vsel %vm41, %v27, 0
  %v49 = vsel %vm41, %v28, 0
  %v52 = vsel %vm41, %v29, 0
  %v55 = vsel %vm41, %v30, 0
  %v58 = vsel %vm41, %v31, 0
  %v61 = vsel %vm41, %v32, 0
  %63 = vmatpush.msra.mxu0 0.0
  %64 = vmatpush.msra.mxu0 0.0
  %65 = vmatpush.msra.mxu0 0.0
  %66 = vmatpush.msra.mxu0 0.0
  %67 = vmatpush.msra.mxu0 0.0
  %68 = vmatpush.msra.mxu0 0.0
  %69 = vmatpush.msra.mxu0 0.0
  %70 = vmatpush.msra.mxu0 0.0
  %71 = vmatpush.msra.mxu0 0.0
  %72 = vmatpush.msra.mxu0 0.0
  %73 = vmatpush.msra.mxu0 0.0
  %74 = vmatpush.msra.mxu0 0.0
  %75 = vmatpush.msra.mxu0 %v36
  %76 = vmatpush.msra.mxu0 %v35
  %77 = vmatpush.msra.mxu0 %v34
  %78 = vmatpush.msra.mxu0 %v33
  %79 = vmatmul.f32.gmra.mxu0 %v43
  %v80 = vpop.f32.mrf.mxu0
  %v81 = vadd.f32 %v39, %v80
  %82 = vmatmul.f32.gmra.mxu0 %v46
  %v83 = vpop.f32.mrf.mxu0
  %v84 = vadd.f32 %v39, %v83
  %85 = vmatmul.f32.gmra.mxu0 %v49
  %v86 = vpop.f32.mrf.mxu0
  %v87 = vadd.f32 %v39, %v86
  %88 = vmatmul.f32.gmra.mxu0 %v52
  %v89 = vpop.f32.mrf.mxu0
  %v90 = vadd.f32 %v39, %v89
  %91 = vmatmul.f32.gmra.mxu0 %v55
  %v92 = vpop.f32.mrf.mxu0
  %v93 = vadd.f32 %v39, %v92
  %94 = vmatmul.f32.gmra.mxu0 %v58
  %v95 = vpop.f32.mrf.mxu0
  %v96 = vadd.f32 %v39, %v95
  %97 = vmatmul.f32.gmra.mxu0 %v61
  %v98 = vpop.f32.mrf.mxu0
  %v99 = vadd.f32 %v39, %v98
  %100 = vdwg.mxu0
  %vm101 = vcmp.ge.f32.partialorder %v81, 0.0
  %vm102 = vcmp.ge.f32.partialorder %v84, 0.0
  %vm103 = vcmp.ge.f32.partialorder %v87, 0.0
  %vm104 = vcmp.ge.f32.partialorder %v90, 0.0
  %vm105 = vcmp.ge.f32.partialorder %v93, 0.0
  %vm106 = vcmp.ge.f32.partialorder %v96, 0.0
  %vm107 = vcmp.ge.f32.partialorder %v99, 0.0
  %v108 = vmul.f32 %v81, 0.01
  %v109 = vmul.f32 %v84, 0.01
  %v110 = vmul.f32 %v87, 0.01
  %v111 = vmul.f32 %v90, 0.01
  %v112 = vmul.f32 %v93, 0.01
  %v113 = vmul.f32 %v96, 0.01
  %v114 = vmul.f32 %v99, 0.01
  %v115 = vsel %vm101, %v81, %v108
  %v116 = vsel %vm102, %v84, %v109
  %v117 = vsel %vm103, %v87, %v110
  %v118 = vsel %vm104, %v90, %v111
  %v119 = vsel %vm105, %v93, %v112
  %v120 = vsel %vm106, %v96, %v113
  %v121 = vsel %vm107, %v99, %v114
  %v122 = vld [vmem:[%s3] sm:$0xff]
  %v123 = vld [vmem:[%s3 + $0x8] sm:$0xff]
  %v124 = vld [vmem:[%s3 + $0x10] sm:$0xff]
  %v125 = vld [vmem:[%s3 + $0x18] sm:$0xff]
  %v126 = vld [vmem:[%s3 + $0x20] sm:$0xff]
  %v127 = vld [vmem:[%s3 + $0x28] sm:$0xff]
  %v128 = vld [vmem:[%s3 + $0x30] sm:$0xff]
  %v129 = vld [vmem:[%s3 + $0x38] sm:$0xff]
  %v130 = vld [vmem:[%s3 + $0x40] sm:$0xff]
  %v131 = vld [vmem:[%s3 + $0x48] sm:$0xff]
  %v132 = vld [vmem:[%s3 + $0x50] sm:$0xff]
  %v133 = vld [vmem:[%s3 + $0x58] sm:$0xff]
  %v134 = vld [vmem:[%s3 + $0x60] sm:$0xff]
  %v135 = vld [vmem:[%s3 + $0x68] sm:$0xff]
  %v136 = vld [vmem:[%s3 + $0x70] sm:$0xff]
  %v137 = vld [vmem:[%s3 + $0x78] sm:$0xff]
  %v138 = vld [vmem:[%s4] sm:$0x1]
  %v140 = vperm.slane %v138, 0
  %142 = vmatpush.msra.mxu0 %v137
  %143 = vmatpush.msra.mxu0 %v136
  %144 = vmatpush.msra.mxu0 %v135
  %145 = vmatpush.msra.mxu0 %v134
  %146 = vmatpush.msra.mxu0 %v133
  %147 = vmatpush.msra.mxu0 %v132
  %148 = vmatpush.msra.mxu0 %v131
  %149 = vmatpush.msra.mxu0 %v130
  %150 = vmatpush.msra.mxu0 %v129
  %151 = vmatpush.msra.mxu0 %v128
  %152 = vmatpush.msra.mxu0 %v127
  %153 = vmatpush.msra.mxu0 %v126
  %154 = vmatpush.msra.mxu0 %v125
  %155 = vmatpush.msra.mxu0 %v124
  %156 = vmatpush.msra.mxu0 %v123
  %157 = vmatpush.msra.mxu0 %v122
  %158 = vmatmul.f32.gmra.mxu0 %v115
  %v159 = vpop.f32.mrf.mxu0
  %v160 = vadd.f32 %v140, %v159
  %161 = vmatmul.f32.gmra.mxu0 %v116
  %v162 = vpop.f32.mrf.mxu0
  %v163 = vadd.f32 %v140, %v162
  %164 = vmatmul.f32.gmra.mxu0 %v117
  %v165 = vpop.f32.mrf.mxu0
  %v166 = vadd.f32 %v140, %v165
  %167 = vmatmul.f32.gmra.mxu0 %v118
  %v168 = vpop.f32.mrf.mxu0
  %v169 = vadd.f32 %v140, %v168
  %170 = vmatmul.f32.gmra.mxu0 %v119
  %v171 = vpop.f32.mrf.mxu0
  %v172 = vadd.f32 %v140, %v171
  %173 = vmatmul.f32.gmra.mxu0 %v120
  %v174 = vpop.f32.mrf.mxu0
  %v175 = vadd.f32 %v140, %v174
  %176 = vmatmul.f32.gmra.mxu0 %v121
  %v177 = vpop.f32.mrf.mxu0
  %v178 = vadd.f32 %v140, %v177
  %179 = vdwg.mxu0
  %vm180 = vcmp.ge.f32.partialorder %v160, 0.0
  %vm181 = vcmp.ge.f32.partialorder %v163, 0.0
  %vm182 = vcmp.ge.f32.partialorder %v166, 0.0
  %vm183 = vcmp.ge.f32.partialorder %v169, 0.0
  %vm184 = vcmp.ge.f32.partialorder %v172, 0.0
  %vm185 = vcmp.ge.f32.partialorder %v175, 0.0
  %vm186 = vcmp.ge.f32.partialorder %v178, 0.0
  %v187 = vmul.f32 %v160, 0.01
  %v188 = vmul.f32 %v163, 0.01
  %v189 = vmul.f32 %v166, 0.01
  %v190 = vmul.f32 %v169, 0.01
  %v191 = vmul.f32 %v172, 0.01
  %v192 = vmul.f32 %v175, 0.01
  %v193 = vmul.f32 %v178, 0.01
  %v194 = vsel %vm180, %v160, %v187
  %v195 = vsel %vm181, %v163, %v188
  %v196 = vsel %vm182, %v166, %v189
  %v197 = vsel %vm183, %v169, %v190
  %v198 = vsel %vm184, %v172, %v191
  %v199 = vsel %vm185, %v175, %v192
  %v200 = vsel %vm186, %v178, %v193
  %v201 = vld [vmem:[%s5] sm:$0xff]
  %v202 = vld [vmem:[%s5 + $0x8] sm:$0xff]
  %v203 = vld [vmem:[%s5 + $0x10] sm:$0xff]
  %v204 = vld [vmem:[%s5 + $0x18] sm:$0xff]
  %v205 = vld [vmem:[%s5 + $0x20] sm:$0xff]
  %v206 = vld [vmem:[%s5 + $0x28] sm:$0xff]
  %v207 = vld [vmem:[%s5 + $0x30] sm:$0xff]
  %v208 = vld [vmem:[%s5 + $0x38] sm:$0xff]
  %v209 = vld [vmem:[%s5 + $0x40] sm:$0xff]
  %v210 = vld [vmem:[%s5 + $0x48] sm:$0xff]
  %v211 = vld [vmem:[%s5 + $0x50] sm:$0xff]
  %v212 = vld [vmem:[%s5 + $0x58] sm:$0xff]
  %v213 = vld [vmem:[%s5 + $0x60] sm:$0xff]
  %v214 = vld [vmem:[%s5 + $0x68] sm:$0xff]
  %v215 = vld [vmem:[%s5 + $0x70] sm:$0xff]
  %v216 = vld [vmem:[%s5 + $0x78] sm:$0xff]
  %v217 = vld [vmem:[%s6] sm:$0x1]
  %v219 = vperm.slane %v217, 0
  %221 = vmatpush.msra.mxu0 %v216
  %222 = vmatpush.msra.mxu0 %v215
  %223 = vmatpush.msra.mxu0 %v214
  %224 = vmatpush.msra.mxu0 %v213
  %225 = vmatpush.msra.mxu0 %v212
  %226 = vmatpush.msra.mxu0 %v211
  %227 = vmatpush.msra.mxu0 %v210
  %228 = vmatpush.msra.mxu0 %v209
  %229 = vmatpush.msra.mxu0 %v208
  %230 = vmatpush.msra.mxu0 %v207
  %231 = vmatpush.msra.mxu0 %v206
  %232 = vmatpush.msra.mxu0 %v205
  %233 = vmatpush.msra.mxu0 %v204
  %234 = vmatpush.msra.mxu0 %v203
  %235 = vmatpush.msra.mxu0 %v202
  %236 = vmatpush.msra.mxu0 %v201
  %237 = vmatmul.f32.gmra.mxu0 %v194
  %v238 = vpop.f32.mrf.mxu0
  %v239 = vadd.f32 %v219, %v238
  %240 = vmatmul.f32.gmra.mxu0 %v195
  %v241 = vpop.f32.mrf.mxu0
  %v242 = vadd.f32 %v219, %v241
  %243 = vmatmul.f32.gmra.mxu0 %v196
  %v244 = vpop.f32.mrf.mxu0
  %v245 = vadd.f32 %v219, %v244
  %246 = vmatmul.f32.gmra.mxu0 %v197
  %v247 = vpop.f32.mrf.mxu0
  %v248 = vadd.f32 %v219, %v247
  %249 = vmatmul.f32.gmra.mxu0 %v198
  %v250 = vpop.f32.mrf.mxu0
  %v251 = vadd.f32 %v219, %v250
  %252 = vmatmul.f32.gmra.mxu0 %v199
  %v253 = vpop.f32.mrf.mxu0
  %v254 = vadd.f32 %v219, %v253
  %255 = vmatmul.f32.gmra.mxu0 %v200
  %v256 = vpop.f32.mrf.mxu0
  %v257 = vadd.f32 %v219, %v256
  %258 = vdwg.mxu0
  %259 = vst [vmem:[%s7] sm:$0xff] %v239
  %260 = vst [vmem:[%s7 + $0x8] sm:$0xff] %v242
  %261 = vst [vmem:[%s7 + $0x10] sm:$0xff] %v245
  %262 = vst [vmem:[%s7 + $0x18] sm:$0xff] %v248
  %263 = vst [vmem:[%s7 + $0x20] sm:$0xff] %v251
  %264 = vst [vmem:[%s7 + $0x28] sm:$0xff] %v254
  %265 = vst [vmem:[%s7 + $0x30] sm:$0xff] %v257
  // Predicated region
  $region30: #{rnd_forward.1} parent=0 // pred_check
    _
  $region31: #{rnd_forward.1} parent=0 // pred_check_branch
    %267 = sbr.rel (0) target = $region33
  $region32: #{rnd_forward.1} parent=0 // pred_region
    _
  $region33: #{rnd_forward.1} parent=0 // pred_fallthru
    _
  // Predicated region
  $region34: #{rnd_forward.1} parent=0 // pred_check
    _
  $region35: #{rnd_forward.1} parent=0 // pred_check_branch
    %269 = sbr.rel (0) target = $region37
  $region36: #{rnd_forward.1} parent=0 // pred_region
    _
  $region37: #{rnd_forward.1} parent=0 // pred_fallthru
    _

</llo_original>
